<compile_context>
chip_gen: v5e
topology: v5e:2x2
jax: 0.10.0
libtpu: 0.0.40
codegen_flags: <defaults>
</compile_context>

<pallas_src>
import jax
import jax.numpy as jnp
from jax.experimental import pallas as pl
from jax.experimental.pallas import tpu as pltpu

VMEM_SPEC = pl.BlockSpec(memory_space=pltpu.MemorySpace.VMEM)


# ----------------------------- Pallas kernels ------------------------------ #

def _enc_proj_kernel(enc_ref, ws_ref, out_ref):
    """k = enc @ Ws -- loop-invariant across decode steps, computed once per sequence."""
    out_ref[...] = jnp.dot(enc_ref[...].astype(jnp.bfloat16), ws_ref[...],
                           preferred_element_type=jnp.float32)


def make_decoder_step_kernel(num_layers, hidden_size):
    """Fused decode step: coverage attention + stacked GRU (seq_len==1) + vocab Linear."""
    L, H = num_layers, hidden_size

    def kernel(*refs):
        (e_ref, h_ref, enc_ref, kpre_ref, cov_ref,
         wqc_ref, battn_ref, vrow_ref, wout_ref, bout_ref) = refs[:10]
        gru_refs = refs[10:10 + 4 * L]
        attnw_ref, ctx_ref, gen_ref, hnew_ref = refs[10 + 4 * L:]

        enc = enc_ref[...]                                   # (B, T, H) f32
        kpre = kpre_ref[...]                                 # (B, T, H) f32  (enc @ Ws)

        # ---- coverage attention: one fused query matmul on the MXU -------------
        # q = hdec @ Wh + cov @ Wc + b  ==  [hdec, cov] @ [Wh; Wc] + b
        hdec = h_ref[L - 1]                                  # (B, H)
        qc = jnp.concatenate([hdec, cov_ref[...]], axis=-1)  # (B, 2H)
        q = jnp.dot(qc.astype(jnp.bfloat16), wqc_ref[...],
                    preferred_element_type=jnp.float32) + battn_ref[...]   # (B, H)

        feat = jnp.tanh(kpre + q[:, None, :])                # (B, T, H) f32
        # scores via VPU multiply + lane reduce (avoids an N=1 MXU matmul)
        v = vrow_ref[...]                                    # (1, H) f32
        scores = jnp.sum(feat * v[None, :, :], axis=-1)      # (B, T)

        m = jnp.max(scores, axis=-1, keepdims=True)
        ex = jnp.exp(scores - m)
        w = ex / jnp.sum(ex, axis=-1, keepdims=True)         # (B, T) softmax

        ctx = jnp.sum(w[:, :, None] * enc, axis=1)           # (B, H)
        attnw_ref[...] = w
        ctx_ref[...] = ctx

        # ---- stacked GRU, gates fused into 2 matmuls per layer ------------------
        # r  = sigmoid(x Wir + h Whr + br)
        # z  = sigmoid(x Wiz + h Whz + bz)
        # n  = tanh(x Win + b_in + r * (h Whn + b_hn))
        # h' = (1 - z) * n + z * h
        layer_in = jnp.concatenate([e_ref[...], ctx], axis=-1)   # (B, E+H)
        for l in range(L):
            wi_ref, wh_ref, bi_ref, bh_ref = gru_refs[4 * l: 4 * l + 4]
            hprev = h_ref[l]                                  # (B, H)
            gi = jnp.dot(layer_in.astype(jnp.bfloat16), wi_ref[...],
                         preferred_element_type=jnp.float32) + bi_ref[...]   # (B, 3H)
            gh = jnp.dot(hprev.astype(jnp.bfloat16), wh_ref[...],
                         preferred_element_type=jnp.float32) + bh_ref[...]   # (B, 3H)
            r = jax.nn.sigmoid(gi[:, :H] + gh[:, :H])
            z = jax.nn.sigmoid(gi[:, H:2 * H] + gh[:, H:2 * H])
            n = jnp.tanh(gi[:, 2 * H:] + r * gh[:, 2 * H:])
            hl = (1.0 - z) * n + z * hprev
            hnew_ref[l] = hl
            layer_in = hl

        # ---- output_layer (Linear hidden -> vocab), fused into the same step ----
        gen_ref[...] = jnp.dot(layer_in.astype(jnp.bfloat16), wout_ref[...],
                               preferred_element_type=jnp.float32) + bout_ref[...]

    return kernel


# ------------------------------ Pallas wrappers ----------------------------- #

@jax.jit
def encoder_projection(prep, enc):
    """Compute k = enc @ Ws once per source sequence (hoisted out of the decode step)."""
    B, T, H = enc.shape
    k_flat = pl.pallas_call(
        _enc_proj_kernel,
        out_shape=jax.ShapeDtypeStruct((B * T, H), jnp.float32),
        in_specs=[VMEM_SPEC, VMEM_SPEC],
        out_specs=VMEM_SPEC,
    )(enc.reshape(B * T, H), prep["Ws"])                      # wrapper-side reshape is free
    return k_flat.reshape(B, T, H)


def _decoder_step_call(prep, e, h, enc, kpre, cov2d):
    L, B, H = h.shape
    T = enc.shape[1]
    V = prep["Wout"].shape[1]
    gru_flat = []
    for lp in prep["gru"]:
        gru_flat += [lp["Wi"], lp["Wh"], lp["bi"], lp["bh"]]
    n_in = 10 + len(gru_flat)

    return pl.pallas_call(
        make_decoder_step_kernel(L, H),
        out_shape=(jax.ShapeDtypeStruct((B, T), jnp.float32),      # attention weights
                   jax.ShapeDtypeStruct((B, H), jnp.float32),      # context
                   jax.ShapeDtypeStruct((B, V), jnp.float32),      # gen (vocab logits)
                   jax.ShapeDtypeStruct((L, B, H), jnp.float32)),  # new hidden state
        in_specs=[VMEM_SPEC] * n_in,
        out_specs=(VMEM_SPEC, VMEM_SPEC, VMEM_SPEC, VMEM_SPEC),
        # write h_new over the old h buffer in an autoregressive decode loop
        input_output_aliases={1: 3},
        # TODO(synk): at realistic B/T add a 'parallel' grid axis (v7x 2-TC) and
        # tile attention over T with an online-softmax accumulator; at B=2 it is overhead.
    )(e, h, enc, kpre, cov2d,
      prep["Wqc"], prep["b_attn"], prep["v_row"], prep["Wout"], prep["bout"],
      *gru_flat)


@jax.jit
def attn_decoder_step(prep, x, h, encoder_output, kpre, cover_vector):
    """One AttnSeq2Seq decode step.

    Returns (attn_weight (B,1,T), context (B,1,H), gen (B,V), out (B,1,H), h (L,B,H)).
    """
    e = prep["embedding"][x]                                  # embedding gather: XLA glue
    cov2d = cover_vector[:, 0, :]                             # (B, H)
    attn_w, ctx, gen, h_new = _decoder_step_call(prep, e, h, encoder_output, kpre, cov2d)
    out = h_new[-1][:, None, :]                               # (B, 1, H)
    return attn_w[:, None, :], ctx[:, None, :], gen, out, h_new


# --------------------------- deterministic params --------------------------- #

def init_params(key, vocab_size, embedding_dim, hidden_size, num_layers):
    ks = jax.random.split(key, 16)
    s = 0.1
    params = {
        "embedding": s * jax.random.normal(ks[0], (vocab_size, embedding_dim), jnp.float32),
        "attn": {
            "Wh": s * jax.random.normal(ks[1], (hidden_size, hidden_size), jnp.float32),
            "Ws": s * jax.random.normal(ks[2], (hidden_size, hidden_size), jnp.float32),
            "Wc": s * jax.random.normal(ks[3], (hidden_size, hidden_size), jnp.float32),
            "v":  s * jax.random.normal(ks[4], (hidden_size, 1), jnp.float32),
            "b":  s * jax.random.normal(ks[5], (1, hidden_size), jnp.float32),
        },
        "Wout": s * jax.random.normal(ks[6], (hidden_size, vocab_size), jnp.float32),
        "bout": s * jax.random.normal(ks[7], (1, vocab_size), jnp.float32),
        "gru": [],
    }
    for l in range(num_layers):
        in_dim = embedding_dim + hidden_size if l == 0 else hidden_size
        lk = jax.random.split(ks[8 + l], 10)
        params["gru"].append({
            "Wir": s * jax.random.normal(lk[0], (in_dim, hidden_size), jnp.float32),
            "Wiz": s * jax.random.normal(lk[1], (in_dim, hidden_size), jnp.float32),
            "Win": s * jax.random.normal(lk[2], (in_dim, hidden_size), jnp.float32),
            "Whr": s * jax.random.normal(lk[3], (hidden_size, hidden_size), jnp.float32),
            "Whz": s * jax.random.normal(lk[4], (hidden_size, hidden_size), jnp.float32),
            "Whn": s * jax.random.normal(lk[5], (hidden_size, hidden_size), jnp.float32),
            "br":  s * jax.random.normal(lk[6], (1, hidden_size), jnp.float32),
            "bz":  s * jax.random.normal(lk[7], (1, hidden_size), jnp.float32),
            "bin": s * jax.random.normal(lk[8], (1, hidden_size), jnp.float32),
            "bhn": s * jax.random.normal(lk[9], (1, hidden_size), jnp.float32),
        })
    return params


def prepare_params(params):
    """One-time wrapper-side prep: concat gate/query weights, cast matmul weights to bf16."""
    ap = params["attn"]
    H = ap["Wh"].shape[0]
    prep = {
        "embedding": params["embedding"],
        "Wqc": jnp.concatenate([ap["Wh"], ap["Wc"]], axis=0).astype(jnp.bfloat16),   # (2H, H)
        "Ws": ap["Ws"].astype(jnp.bfloat16),                                          # (H, H)
        "b_attn": ap["b"],                                                            # (1, H) f32
        "v_row": ap["v"].reshape(1, H),                                               # (1, H) f32
        "Wout": params["Wout"].astype(jnp.bfloat16),                                  # (H, V)
        "bout": params["bout"],                                                       # (1, V) f32
        "gru": [],
    }
    for lp in params["gru"]:
        prep["gru"].append({
            "Wi": jnp.concatenate([lp["Wir"], lp["Wiz"], lp["Win"]],
                                  axis=1).astype(jnp.bfloat16),                       # (In, 3H)
            "Wh": jnp.concatenate([lp["Whr"], lp["Whz"], lp["Whn"]],
                                  axis=1).astype(jnp.bfloat16),                       # (H, 3H)
            "bi": jnp.concatenate([lp["br"], lp["bz"], lp["bin"]], axis=1),           # (1, 3H)
            "bh": jnp.concatenate([jnp.zeros_like(lp["br"]),
                                   jnp.zeros_like(lp["bz"]), lp["bhn"]], axis=1),     # (1, 3H)
        })
    return prep


# ------------------------------ pure-JAX reference -------------------------- #

def reference_forward(params, x, h, enc, cov):
    """Mirrors the kernel math exactly (bf16 matmul inputs, f32 accumulation,
    f32 elementwise), which is mathematically the original GRU/attention forward."""
    H = h.shape[-1]
    B, T, _ = enc.shape

    def bdot(a, b):
        return jnp.dot(a.astype(jnp.bfloat16), b.astype(jnp.bfloat16),
                       preferred_element_type=jnp.float32)

    e = params["embedding"][x]
    ap = params["attn"]
    Wqc = jnp.concatenate([ap["Wh"], ap["Wc"]], axis=0)
    qc = jnp.concatenate([h[-1], cov[:, 0, :]], axis=-1)
    q = bdot(qc, Wqc) + ap["b"]
    k = bdot(enc.reshape(B * T, H), ap["Ws"]).reshape(B, T, H)
    feat = jnp.tanh(k + q[:, None, :])
    scores = jnp.sum(feat * ap["v"].reshape(1, 1, H), axis=-1)
    w = jax.nn.softmax(scores, axis=-1)
    context = jnp.einsum("bt,bth->bh", w, enc)

    layer_in = jnp.concatenate([e, context], axis=-1)
    new_h = []
    for l, lp in enumerate(params["gru"]):
        hprev = h[l]
        Wi = jnp.concatenate([lp["Wir"], lp["Wiz"], lp["Win"]], axis=1)
        Wh = jnp.concatenate([lp["Whr"], lp["Whz"], lp["Whn"]], axis=1)
        gi = bdot(layer_in, Wi) + jnp.concatenate([lp["br"], lp["bz"], lp["bin"]], axis=1)
        gh = bdot(hprev, Wh) + jnp.concatenate(
            [jnp.zeros_like(lp["br"]), jnp.zeros_like(lp["bz"]), lp["bhn"]], axis=1)
        r = jax.nn.sigmoid(gi[:, :H] + gh[:, :H])
        z = jax.nn.sigmoid(gi[:, H:2 * H] + gh[:, H:2 * H])
        n = jnp.tanh(gi[:, 2 * H:] + r * gh[:, 2 * H:])
        hl = (1.0 - z) * n + z * hprev
        new_h.append(hl)
        layer_in = hl

    gen = bdot(layer_in, params["Wout"]) + params["bout"]
    return (w[:, None, :], context[:, None, :], gen, layer_in[:, None, :],
            jnp.stack(new_h, axis=0))


# ----------------------------------- main ----------------------------------- #

if __name__ == "__main__":
    B, T, H, E, L, V = 2, 8, 32, 16, 2, 50

    key = jax.random.PRNGKey(0)
    kp, kx, kh, ke, kc = jax.random.split(key, 5)

    params = init_params(kp, V, E, H, L)
    prep = prepare_params(params)

    x = jax.random.randint(kx, (B,), 0, V, dtype=jnp.int32)          # decoder token ids
    h = jax.random.normal(kh, (L, B, H), jnp.float32)                # GRU hidden state
    encoder_output = jax.random.normal(ke, (B, T, H), jnp.float32)
    cover_vector = jax.random.normal(kc, (B, 1, H), jnp.float32)

    # encoder projection enc @ Ws: computed once per source sequence, reused every step
    kpre = encoder_projection(prep, encoder_output)

    attn_w, ctx, gen, out, h_new = attn_decoder_step(
        prep, x, h, encoder_output, kpre, cover_vector)
    jax.block_until_ready((attn_w, ctx, gen, out, h_new))

    # correctness check against a pure-JAX reference mirroring the same math
    ref = reference_forward(params, x, h, encoder_output, cover_vector)
    for got, want in zip((attn_w, ctx, gen, out, h_new), ref):
        assert got.shape == want.shape, (got.shape, want.shape)
        assert jnp.allclose(got, want, rtol=1e-3, atol=1e-3), \
            float(jnp.max(jnp.abs(got - want)))

    assert attn_w.shape == (B, 1, T)
    assert ctx.shape == (B, 1, H)
    assert gen.shape == (B, V)
    assert out.shape == (B, 1, H)
    assert h_new.shape == (L, B, H)

    # short autoregressive-style decode loop (what AttnSeq2Seq.forward does per step),
    # reusing the hoisted encoder projection and feeding h back each step.
    # TODO(synk): encoder module, pointer network and final_distribution scatter_add are
    # external / host-side in the spec and are not kernelized here.
    h_loop = h_new
    for _ in range(3):
        attn_w, ctx, gen, out, h_loop = attn_decoder_step(
            prep, x, h_loop, encoder_output, kpre, cover_vector)
    jax.block_until_ready(h_loop)

    print("KERNEL_OK")
</pallas_src>

<mosaic_0001>
module attributes {stable_mosaic.version = 11 : i64} {
  func.func @_enc_proj_kernel(%arg0: memref<16x32xf32, #tpu.memory_space<vmem>>, %arg1: memref<32x32xbf16, #tpu.memory_space<vmem>>, %arg2: memref<16x32xf32, #tpu.memory_space<vmem>>) attributes {dimension_semantics = [], scalar_prefetch = 0 : i64, scratch_operands = 0 : i64, tpu.core_type = #tpu.core_type<tc>} {
    %c0 = arith.constant 0 : index
    %c0_0 = arith.constant 0 : index
    %0 = vector.load %arg0[%c0, %c0_0] : memref<16x32xf32, #tpu.memory_space<vmem>>, vector<16x32xf32>
    %1 = arith.truncf %0 : vector<16x32xf32> to vector<16x32xbf16>
    %c0_1 = arith.constant 0 : index
    %c0_2 = arith.constant 0 : index
    %2 = vector.load %arg1[%c0_1, %c0_2] : memref<32x32xbf16, #tpu.memory_space<vmem>>, vector<32x32xbf16>
    %cst = arith.constant dense<0.000000e+00> : vector<16x32xf32>
    %3 = tpu.matmul %1, %2, %cst {dimension_numbers = #tpu.dot_dimension_numbers<[1], [0], [0], [1], [0, 0, 1, 1], [], []>} : vector<16x32xbf16>, vector<32x32xbf16>, vector<16x32xf32> -> vector<16x32xf32>
    %c0_3 = arith.constant 0 : index
    %c0_4 = arith.constant 0 : index
    %4 = vector.load %arg2[%c0_3, %c0_4] : memref<16x32xf32, #tpu.memory_space<vmem>>, vector<16x32xf32>
    tpu.vector_store %arg2[%c0_3, %c0_4], %3 {strides = array<i32>} : memref<16x32xf32, #tpu.memory_space<vmem>>, vector<16x32xf32>,
    return
  }
}

</mosaic_0001>

<llo_original>
// kernel: encoder_projection.1
$region0: #{encoder_projection.1}
  #allocation0 [shape = 'u32[]', space=smem, size = 0x4, offset = 0x4, fixed_abs, tag = 'smem constant byte address 0x4 - core index']
  #allocation1 [shape = 'u32[72,128]{1,0:T(1,128)}', space=vmem, size = 0x9000, scoped, tag = 'internal scratch']
  %s0 = inlined_call_operand.hbm [shape: f32[16,32], index: 0, kind: input, shape index: {}]
  %s1 = inlined_call_operand.hbm [shape: bf16[32,32], index: 1, kind: input, shape index: {}]
  %s2 = inlined_call_operand.hbm [shape: f32[16,32], index: 2, kind: output, shape index: {}]
  %s3 = sld [smem:[#allocation0]]
  $region26: #{encoder_projection.1} parent=0
    _
  %s5 = ssub.s32 1, %s3
  %s6 = scalar_select 0, %s5, %s3
  $region1: #{encoder_projection.1} parent=0
    #allocation2 [shape = 'u8[8192]{0}', space=vmem, size = 0x2000, scoped, tag = 'input window, operand 0, single buffered']
    #allocation3 [shape = 's32[1]{0}', space=sflag, size = 0x4, scoped, tag = 'scoped memory for encoder_projection.1']
    #allocation4 [shape = 's32[1]{0}', space=sflag, size = 0x4, scoped, tag = 'scoped memory for encoder_projection.1']
    #allocation5 [shape = 'u8[8192]{0}', space=vmem, size = 0x2000, scoped, tag = 'input window, operand 1, single buffered']
    #allocation6 [shape = 's32[1]{0}', space=sflag, size = 0x4, scoped, tag = 'scoped memory for encoder_projection.1']
    #allocation7 [shape = 'u8[8192]{0}', space=vmem, size = 0x2000, scoped, tag = 'output window, operand 0, single buffered']
    %7 = vsyncpa [#allocation3], 0
    %8 = vsyncpa [#allocation6], 0
    %9 = vsyncpa [#allocation4], 0
    // Predicated region
    $region2: #{encoder_projection.1} parent=1 // pred_check
      _
    $region3: #{encoder_projection.1} parent=1 // pred_check_branch
      %11 = sbr.rel (0) target = $region5
    $region4: #{encoder_projection.1} parent=1 // pred_region
      %13 = vsyncadd [#allocation3], 0
      %s14 = sshll.u32 %s0, 4
      %s15 = int_to_ptr.hbm [resolvable:$true] %s14
      %s16 = sshll.u32 [#allocation2], 4
      %s17 = int_to_ptr.vmem [resolvable:$true] %s16
      %22 = dma.hbm_to_vmem [thread:$0]  %s15, 256, %s17, [#allocation3], 128, 128, 8
    $region5: #{encoder_projection.1} parent=1 // pred_fallthru
      _
    // Predicated region
    $region6: #{encoder_projection.1} parent=1 // pred_check
      _
    $region7: #{encoder_projection.1} parent=1 // pred_check_branch
      %24 = sbr.rel (0) target = $region9
    $region8: #{encoder_projection.1} parent=1 // pred_region
      %26 = vsyncadd [#allocation6], 0
      %s27 = sshll.u32 %s1, 4
      %s28 = int_to_ptr.hbm [resolvable:$true] %s27
      %s29 = sshll.u32 [#allocation5], 4
      %s30 = int_to_ptr.vmem [resolvable:$true] %s29
      %35 = dma.hbm_to_vmem [thread:$0]  %s28, 256, %s30, [#allocation6], 64, 64, 4
    $region9: #{encoder_projection.1} parent=1 // pred_fallthru
      _
    // Predicated region
    $region10: #{encoder_projection.1} parent=1 // pred_check
      _
    $region11: #{encoder_projection.1} parent=1 // pred_check_branch
      %37 = sbr.rel (0) target = $region13
    $region12: #{encoder_projection.1} parent=1 // pred_region
      %39 = dma.done [#allocation3], 256
    $region13: #{encoder_projection.1} parent=1 // pred_fallthru
      _
    // Predicated region
    $region14: #{encoder_projection.1} parent=1 // pred_check
      _
    $region15: #{encoder_projection.1} parent=1 // pred_check_branch
      %41 = sbr.rel (0) target = $region17
    $region16: #{encoder_projection.1} parent=1 // pred_region
      %43 = dma.done [#allocation6], 256
    $region17: #{encoder_projection.1} parent=1 // pred_fallthru
      _
    %v45 = vld [vmem:[#allocation2] sm:$0xff]
    %v46 = vld [vmem:[#allocation2 + $0x8] sm:$0xff]
    %v47 = vpack.c.bf16 %v46, %v45
    %v48 = vld [vmem:[#allocation5] sm:$0xf]
    %v49 = vld [vmem:[#allocation5 + $0x4] sm:$0xf]
    %v50 = vld [vmem:[#allocation5 + $0x8] sm:$0xf]
    %v51 = vld [vmem:[#allocation5 + $0xc] sm:$0xf]
    %v56 = vunpack.c.l.b16 %v48
    %v57 = vunpack.c.l.b16 %v49
    %v58 = vunpack.c.l.b16 %v50
    %v59 = vunpack.c.l.b16 %v51
    %v60 = vpack.c.b16 %v57, %v56
    %v61 = vpack.c.b16 %v59, %v58
    %vm64 = vcmask 261120
    %v66 = vsel %vm64, %v47, 0
    %68 = vmatpush.bf16.msra.mxu0 0
    %69 = vmatpush.bf16.msra.mxu0 0
    %70 = vmatpush.bf16.msra.mxu0 0
    %71 = vmatpush.bf16.msra.mxu0 0
    %72 = vmatpush.bf16.msra.mxu0 0
    %73 = vmatpush.bf16.msra.mxu0 0
    %74 = vmatpush.bf16.msra.mxu0 %v61
    %75 = vmatpush.bf16.msra.mxu0 %v60
    %76 = vmatmul.bf16.gmra.mxu0 %v66
    %v77 = vpop.f32.mrf.mxu0
    %v78 = vadd.f32 0.0, %v77
    %v79 = vpop.f32.mrf.mxu0
    %v80 = vadd.f32 0.0, %v79
    %81 = vdwg.mxu0
    %82 = vst.msk [vmem:[#allocation7] sm:$0xff] %vm64, %v78
    %83 = vst.msk [vmem:[#allocation7 + $0x8] sm:$0xff] %vm64, %v80
    // Predicated region
    $region18: #{encoder_projection.1} parent=1 // pred_check
      _
    $region19: #{encoder_projection.1} parent=1 // pred_check_branch
      %85 = sbr.rel (0) target = $region21
    $region20: #{encoder_projection.1} parent=1 // pred_region
      %87 = vsyncadd [#allocation4], 0
      %s88 = sshll.u32 [#allocation7], 4
      %s89 = int_to_ptr.vmem [resolvable:$true] %s88
      %s90 = sshll.u32 %s2, 4
      %s91 = int_to_ptr.hbm [resolvable:$true] %s90
      %96 = dma.vmem_to_hbm [thread:$0]  %s89, 256, %s91, [#allocation4], 128, 128, 8
    $region21: #{encoder_projection.1} parent=1 // pred_fallthru
      _
    // Predicated region
    $region22: #{encoder_projection.1} parent=1 // pred_check
      _
    $region23: #{encoder_projection.1} parent=1 // pred_check_branch
      %98 = sbr.rel (0) target = $region25
    $region24: #{encoder_projection.1} parent=1 // pred_region
      %100 = dma.done [#allocation4], 256
    $region25: #{encoder_projection.1} parent=1 // pred_fallthru
      _
    %101 = vsyncpa [#allocation3], 1
    %102 = vsyncpa [#allocation6], 1
    %103 = vsyncpa [#allocation4], 1

</llo_original>
